<compile_context>
chip_gen: v7x
topology: tpu7x:2x2x1
jax: 0.10.0
libtpu: 0.0.40
codegen_flags: <defaults>
</compile_context>

<pallas_src>
import functools

import jax
import jax.numpy as jnp
from jax.experimental import pallas as pl
from jax.experimental.pallas import tpu as pltpu


def _actor_kernel(x_ref, w1_ref, b1_ref, w2_ref, b2_ref, w3_ref, b3_ref,
                  o_ref, *, max_action):
    # Layer 1: Linear + ReLU (bf16 operands, f32 MXU accumulation, f32 bias).
    h = jnp.dot(x_ref[...], w1_ref[...], preferred_element_type=jnp.float32)
    h = jnp.maximum(h + b1_ref[...], 0.0)
    # Layer 2: Linear + ReLU.
    h = jnp.dot(h.astype(w2_ref.dtype), w2_ref[...],
                preferred_element_type=jnp.float32)
    h = jnp.maximum(h + b2_ref[...], 0.0)
    # Layer 3: Linear + tanh (EUP), scaled by max_action. Output lanes are
    # zero-padded to 128; padded lanes produce tanh(0)=0 and are sliced off
    # in the wrapper.
    h = jnp.dot(h.astype(w3_ref.dtype), w3_ref[...],
                preferred_element_type=jnp.float32)
    o_ref[...] = (max_action * jnp.tanh(h + b3_ref[...])).astype(o_ref.dtype)


def _round_up(x, m):
    return ((x + m - 1) // m) * m


def actor_forward(state, params, max_action, *, tile_b=None,
                  compute_dtype=jnp.bfloat16):
    """state: (B, state_dim) f32. params: (in, out) weights, (1, out) biases.

    Returns (B, action_dim) f32 actions.
    """
    B, state_dim = state.shape
    hidden = params["w1"].shape[1]
    action_dim = params["w3"].shape[1]

    LANE = 128
    # Pad layer-1 contraction dim to a bf16 sublane-pack multiple (32).
    padded_k = _round_up(state_dim, 32)
    # Pad output last dim to a full lane width for unmasked lane-dense stores.
    padded_a = _round_up(action_dim, LANE)

    # Tile selection (perf review): single grid step for typical TD3 batches,
    # >=256-row multiple-of-256 tiles for large eval batches so both v7x TCs
    # get substantial work and v6e MXU M amortization is good.
    if tile_b is None:
        if B <= 2048:
            tile_b = max(8, _round_up(B, 8))      # one grid step
        else:
            tile_b = 512
    assert tile_b % 8 == 0, "tile_b must be a multiple of 8 (sublane tiling)"

    grid_b = pl.cdiv(B, tile_b)
    padded_b = grid_b * tile_b

    # --- Wrapper-side casts / padding (all zero-padding, result-preserving). ---
    x = state.astype(compute_dtype)
    x = jnp.pad(x, ((0, padded_b - B), (0, padded_k - state_dim)))

    w1 = jnp.pad(params["w1"], ((0, padded_k - state_dim), (0, 0))
                 ).astype(compute_dtype)
    w2 = params["w2"].astype(compute_dtype)
    w3 = jnp.pad(params["w3"], ((0, 0), (0, padded_a - action_dim))
                 ).astype(compute_dtype)
    # Biases stay in f32 (no bf16 round-trip).
    b1 = params["b1"].astype(jnp.float32)
    b2 = params["b2"].astype(jnp.float32)
    b3 = jnp.pad(params["b3"].astype(jnp.float32),
                 ((0, 0), (0, padded_a - action_dim)))

    itemsize = jnp.dtype(compute_dtype).itemsize
    weight_bytes = (w1.size + w2.size + w3.size) * itemsize \
        + (b1.size + b2.size + b3.size) * 4
    cost = pl.CostEstimate(
        flops=2 * padded_b * (padded_k * hidden
                              + hidden * hidden
                              + hidden * padded_a),
        transcendentals=padded_b * padded_a,
        bytes_accessed=(padded_b * padded_k * itemsize     # x in
                        + padded_b * padded_a * 4          # out (f32)
                        + weight_bytes),                   # resident params
    )

    def resident(shape):
        # Constant block index -> block stays in VMEM across all grid steps.
        return pl.BlockSpec(shape, lambda i: (0, 0))

    kernel = functools.partial(_actor_kernel, max_action=float(max_action))

    out = pl.pallas_call(
        kernel,
        out_shape=jax.ShapeDtypeStruct((padded_b, padded_a), jnp.float32),
        grid=(grid_b,),
        in_specs=[
            pl.BlockSpec((tile_b, padded_k), lambda i: (i, 0)),   # streamed x
            resident((padded_k, hidden)), resident((1, hidden)),  # l1
            resident((hidden, hidden)),   resident((1, hidden)),  # l2
            resident((hidden, padded_a)), resident((1, padded_a)),  # l3
        ],
        out_specs=pl.BlockSpec((tile_b, padded_a), lambda i: (i, 0)),
        compiler_params=pltpu.CompilerParams(
            dimension_semantics=("parallel",)),
        cost_estimate=cost,
    )(x, w1, b1, w2, b2, w3, b3)

    return out[:B, :action_dim]


def init_actor_params(key, state_dim, action_dim, hidden=256):
    """Deterministic synthetic init. Weights stored as (in, out) — i.e. W^T
    relative to PyTorch's nn.Linear (out, in). Biases as (1, out)."""
    ks = jax.random.split(key, 6)

    def uni(k, shape, fan_in):
        bound = 1.0 / jnp.sqrt(fan_in)
        return jax.random.uniform(k, shape, jnp.float32, -bound, bound)

    return {
        "w1": uni(ks[0], (state_dim, hidden), state_dim),
        "b1": uni(ks[1], (1, hidden), state_dim),
        "w2": uni(ks[2], (hidden, hidden), hidden),
        "b2": uni(ks[3], (1, hidden), hidden),
        "w3": uni(ks[4], (hidden, action_dim), hidden),
        "b3": uni(ks[5], (1, action_dim), hidden),
    }


def actor_ref(state, params, max_action):
    """Pure-JAX f32 reference for validation."""
    h = jnp.maximum(state @ params["w1"] + params["b1"], 0.0)
    h = jnp.maximum(h @ params["w2"] + params["b2"], 0.0)
    return max_action * jnp.tanh(h @ params["w3"] + params["b3"])


if __name__ == "__main__":
    key = jax.random.PRNGKey(0)
    k_params, k_state = jax.random.split(key)

    batch = 20           # not a multiple of 8 -> exercises the pad/slice path
    state_dim = 17       # HalfCheetah-style observation size (pads to 32)
    action_dim = 6       # pads to 128 lanes for lane-dense stores
    max_action = 2.0

    params = init_actor_params(k_params, state_dim, action_dim)
    state = jax.random.normal(k_state, (batch, state_dim), jnp.float32)

    # Default tiling: whole batch in one grid step (B <= 2048).
    out = actor_forward(state, params, max_action)
    out = jax.block_until_ready(out)

    expected = actor_ref(state, params, max_action)
    assert out.shape == (batch, action_dim)
    # bf16 weights/activations vs f32 reference: ~1e-2-level deviation expected.
    max_err = float(jnp.max(jnp.abs(out - expected)))
    assert jnp.allclose(out, expected, atol=5e-2, rtol=5e-2), max_err

    # Also exercise the multi-step (large-batch) path once.
    big_state = jax.random.normal(k_state, (600, state_dim), jnp.float32)
    out_big = jax.block_until_ready(
        actor_forward(big_state, params, max_action, tile_b=256))
    exp_big = actor_ref(big_state, params, max_action)
    assert out_big.shape == (600, action_dim)
    assert jnp.allclose(out_big, exp_big, atol=5e-2, rtol=5e-2)

    print("KERNEL_OK")
</pallas_src>

<mosaic_0001>
module attributes {stable_mosaic.version = 11 : i64} {
  func.func @_actor_kernel(%arg0: i32, %arg1: memref<24x32xbf16, #tpu.memory_space<vmem>>, %arg2: memref<32x256xbf16, #tpu.memory_space<vmem>>, %arg3: memref<1x256xf32, #tpu.memory_space<vmem>>, %arg4: memref<256x256xbf16, #tpu.memory_space<vmem>>, %arg5: memref<1x256xf32, #tpu.memory_space<vmem>>, %arg6: memref<256x128xbf16, #tpu.memory_space<vmem>>, %arg7: memref<1x128xf32, #tpu.memory_space<vmem>>, %arg8: memref<24x128xf32, #tpu.memory_space<vmem>>) attributes {dimension_semantics = [#tpu.dimension_semantics<parallel>], iteration_bounds = array<i64: 1>, scalar_prefetch = 0 : i64, scratch_operands = 0 : i64, tpu.core_type = #tpu.core_type<tc>, window_params = [{transform_indices = @transform_0, window_bounds = array<i64: 24, 32>}, {pipeline_mode = #tpu.pipeline_mode<synchronous>, transform_indices = @transform_1, window_bounds = array<i64: 32, 256>}, {pipeline_mode = #tpu.pipeline_mode<synchronous>, transform_indices = @transform_2, window_bounds = array<i64: 1, 256>}, {pipeline_mode = #tpu.pipeline_mode<synchronous>, transform_indices = @transform_3, window_bounds = array<i64: 256, 256>}, {pipeline_mode = #tpu.pipeline_mode<synchronous>, transform_indices = @transform_4, window_bounds = array<i64: 1, 256>}, {pipeline_mode = #tpu.pipeline_mode<synchronous>, transform_indices = @transform_5, window_bounds = array<i64: 256, 128>}, {pipeline_mode = #tpu.pipeline_mode<synchronous>, transform_indices = @transform_6, window_bounds = array<i64: 1, 128>}, {transform_indices = @transform_7, window_bounds = array<i64: 24, 128>}]} {
    %c0 = arith.constant 0 : index
    %c0_0 = arith.constant 0 : index
    %0 = vector.load %arg1[%c0, %c0_0] : memref<24x32xbf16, #tpu.memory_space<vmem>>, vector<24x32xbf16>
    %c0_1 = arith.constant 0 : index
    %c0_2 = arith.constant 0 : index
    %1 = vector.load %arg2[%c0_1, %c0_2] : memref<32x256xbf16, #tpu.memory_space<vmem>>, vector<32x256xbf16>
    %cst = arith.constant dense<0.000000e+00> : vector<24x256xf32>
    %2 = tpu.matmul %0, %1, %cst {dimension_numbers = #tpu.dot_dimension_numbers<[1], [0], [0], [1], [0, 0, 1, 1], [], []>} : vector<24x32xbf16>, vector<32x256xbf16>, vector<24x256xf32> -> vector<24x256xf32>
    %c0_3 = arith.constant 0 : index
    %c0_4 = arith.constant 0 : index
    %3 = vector.load %arg3[%c0_3, %c0_4] : memref<1x256xf32, #tpu.memory_space<vmem>>, vector<1x256xf32>
    %4 = vector.broadcast %3 : vector<1x256xf32> to vector<24x256xf32>
    %5 = arith.addf %2, %4 : vector<24x256xf32>
    %cst_5 = arith.constant 0.000000e+00 : f32
    %6 = vector.broadcast %cst_5 : f32 to vector<24x256xf32>
    %7 = arith.maximumf %5, %6 : vector<24x256xf32>
    %8 = arith.truncf %7 : vector<24x256xf32> to vector<24x256xbf16>
    %c0_6 = arith.constant 0 : index
    %c0_7 = arith.constant 0 : index
    %9 = vector.load %arg4[%c0_6, %c0_7] : memref<256x256xbf16, #tpu.memory_space<vmem>>, vector<256x256xbf16>
    %cst_8 = arith.constant dense<0.000000e+00> : vector<24x256xf32>
    %10 = tpu.matmul %8, %9, %cst_8 {dimension_numbers = #tpu.dot_dimension_numbers<[1], [0], [0], [1], [0, 0, 1, 1], [], []>} : vector<24x256xbf16>, vector<256x256xbf16>, vector<24x256xf32> -> vector<24x256xf32>
    %c0_9 = arith.constant 0 : index
    %c0_10 = arith.constant 0 : index
    %11 = vector.load %arg5[%c0_9, %c0_10] : memref<1x256xf32, #tpu.memory_space<vmem>>, vector<1x256xf32>
    %12 = vector.broadcast %11 : vector<1x256xf32> to vector<24x256xf32>
    %13 = arith.addf %10, %12 : vector<24x256xf32>
    %cst_11 = arith.constant 0.000000e+00 : f32
    %14 = vector.broadcast %cst_11 : f32 to vector<24x256xf32>
    %15 = arith.maximumf %13, %14 : vector<24x256xf32>
    %16 = arith.truncf %15 : vector<24x256xf32> to vector<24x256xbf16>
    %c0_12 = arith.constant 0 : index
    %c0_13 = arith.constant 0 : index
    %17 = vector.load %arg6[%c0_12, %c0_13] : memref<256x128xbf16, #tpu.memory_space<vmem>>, vector<256x128xbf16>
    %cst_14 = arith.constant dense<0.000000e+00> : vector<24x128xf32>
    %18 = tpu.matmul %16, %17, %cst_14 {dimension_numbers = #tpu.dot_dimension_numbers<[1], [0], [0], [1], [0, 0, 1, 1], [], []>} : vector<24x256xbf16>, vector<256x128xbf16>, vector<24x128xf32> -> vector<24x128xf32>
    %c0_15 = arith.constant 0 : index
    %c0_16 = arith.constant 0 : index
    %19 = vector.load %arg7[%c0_15, %c0_16] : memref<1x128xf32, #tpu.memory_space<vmem>>, vector<1x128xf32>
    %20 = vector.broadcast %19 : vector<1x128xf32> to vector<24x128xf32>
    %21 = arith.addf %18, %20 : vector<24x128xf32>
    %22 = math.tanh %21 : vector<24x128xf32>
    %cst_17 = arith.constant 2.000000e+00 : f32
    %23 = vector.broadcast %cst_17 : f32 to vector<24x128xf32>
    %24 = arith.mulf %23, %22 : vector<24x128xf32>
    %c0_18 = arith.constant 0 : index
    %c0_19 = arith.constant 0 : index
    %25 = vector.load %arg8[%c0_18, %c0_19] : memref<24x128xf32, #tpu.memory_space<vmem>>, vector<24x128xf32>
    tpu.vector_store %arg8[%c0_18, %c0_19], %24 {strides = array<i32>} : memref<24x128xf32, #tpu.memory_space<vmem>>, vector<24x128xf32>,
    return
  }
  func.func @transform_0(%arg0: i32) -> (i32, i32) {
    %c0_i32 = arith.constant 0 : i32
    %c0_i32_0 = arith.constant 0 : i32
    return %arg0, %c0_i32 : i32, i32
  }
  func.func @transform_1(%arg0: i32) -> (i32, i32) {
    %c0_i32 = arith.constant 0 : i32
    %c0_i32_0 = arith.constant 0 : i32
    %c0_i32_1 = arith.constant 0 : i32
    return %c0_i32, %c0_i32_0 : i32, i32
  }
  func.func @transform_2(%arg0: i32) -> (i32, i32) {
    %c0_i32 = arith.constant 0 : i32
    %c0_i32_0 = arith.constant 0 : i32
    %c0_i32_1 = arith.constant 0 : i32
    return %c0_i32, %c0_i32_0 : i32, i32
  }
  func.func @transform_3(%arg0: i32) -> (i32, i32) {
    %c0_i32 = arith.constant 0 : i32
    %c0_i32_0 = arith.constant 0 : i32
    %c0_i32_1 = arith.constant 0 : i32
    return %c0_i32, %c0_i32_0 : i32, i32
  }
  func.func @transform_4(%arg0: i32) -> (i32, i32) {
    %c0_i32 = arith.constant 0 : i32
    %c0_i32_0 = arith.constant 0 : i32
    %c0_i32_1 = arith.constant 0 : i32
    return %c0_i32, %c0_i32_0 : i32, i32
  }
  func.func @transform_5(%arg0: i32) -> (i32, i32) {
    %c0_i32 = arith.constant 0 : i32
    %c0_i32_0 = arith.constant 0 : i32
    %c0_i32_1 = arith.constant 0 : i32
    return %c0_i32, %c0_i32_0 : i32, i32
  }
  func.func @transform_6(%arg0: i32) -> (i32, i32) {
    %c0_i32 = arith.constant 0 : i32
    %c0_i32_0 = arith.constant 0 : i32
    %c0_i32_1 = arith.constant 0 : i32
    return %c0_i32, %c0_i32_0 : i32, i32
  }
  func.func @transform_7(%arg0: i32) -> (i32, i32) {
    %c0_i32 = arith.constant 0 : i32
    %c0_i32_0 = arith.constant 0 : i32
    return %arg0, %c0_i32 : i32, i32
  }
}

</mosaic_0001>

<llo_original>
// kernel: tpu_custom_call.1
$region0: #{tpu_custom_call.1}
  #allocation0 [shape = 'u32[]', space=smem, size = 0x4, offset = 0x4, fixed_abs, tag = 'smem constant byte address 0x4 - core index']
  #allocation1 [shape = 'u32[144,128]{1,0:T(1,128)}', space=vmem, size = 0x12000, scoped, tag = 'internal scratch']
  %s0 = inlined_call_operand.hbm [shape: bf16[24,32], index: 0, kind: input, shape index: {}]
  %s1 = inlined_call_operand.hbm [shape: bf16[32,256], index: 1, kind: input, shape index: {}]
  %s2 = inlined_call_operand.vmem [shape: f32[1,256], index: 2, kind: input, shape index: {}]
  %s3 = inlined_call_operand.hbm [shape: bf16[256,256], index: 3, kind: input, shape index: {}]
  %s4 = inlined_call_operand.vmem [shape: f32[1,256], index: 4, kind: input, shape index: {}]
  %s5 = inlined_call_operand.hbm [shape: bf16[256,128], index: 5, kind: input, shape index: {}]
  %s6 = inlined_call_operand.vmem [shape: f32[1,128], index: 6, kind: input, shape index: {}]
  %s7 = inlined_call_operand.hbm [shape: f32[24,128], index: 7, kind: output, shape index: {}]
  %s8 = sld [smem:[#allocation0]]
  $region54: #{tpu_custom_call.1} parent=0
    _
  %s10 = ssub.s32 1, %s8
  %s11 = scalar_select 0, %s10, %s8
  $region1: #{tpu_custom_call.1} parent=0
    #allocation2 [shape = 'u8[6144]{0}', space=vmem, size = 0x1800, scoped, tag = 'input window, operand 0, single buffered']
    #allocation3 [shape = 's32[1]{0}', space=sflag, size = 0x4, scoped, tag = 'scoped memory for tpu_custom_call.1']
    #allocation4 [shape = 's32[1]{0}', space=sflag, size = 0x4, scoped, tag = 'scoped memory for tpu_custom_call.1']
    #allocation5 [shape = 'u8[16384]{0}', space=vmem, size = 0x4000, scoped, tag = 'input window, operand 1, single buffered']
    #allocation6 [shape = 's32[1]{0}', space=sflag, size = 0x4, scoped, tag = 'scoped memory for tpu_custom_call.1']
    #allocation7 [shape = 'u8[131072]{0}', space=vmem, size = 0x20000, scoped, tag = 'input window, operand 3, single buffered']
    #allocation8 [shape = 'u8[65536]{0}', space=vmem, size = 0x10000, scoped, tag = 'input window, operand 5, single buffered']
    #allocation9 [shape = 's32[1]{0}', space=sflag, size = 0x4, scoped, tag = 'scoped memory for tpu_custom_call.1']
    #allocation10 [shape = 'u8[12288]{0}', space=vmem, size = 0x3000, scoped, tag = 'output window, operand 0, single buffered']
    %12 = vsyncpa [#allocation3], 0
    %13 = vsyncpa [#allocation6], 0
    %14 = vsyncpa [#allocation9], 0
    %15 = vsyncpa [#allocation4], 0
    // Predicated region
    $region2: #{tpu_custom_call.1} parent=1 // pred_check
      _
    $region3: #{tpu_custom_call.1} parent=1 // pred_check_branch
      %17 = sbr.rel (0) target = $region5
    $region4: #{tpu_custom_call.1} parent=1 // pred_region
      %s19 = ssub.s32 192, 192
      %20 = vsyncadd [#allocation3], %s19
      %s21 = sshll.u32 [#allocation2], 4
      %s22 = int_to_ptr.vmem [resolvable:$true] %s21
      %27 = dma.hbm_to_vmem [thread:$0]  %s0, 192, %s22, [#allocation3], 64, 64, 4
    $region5: #{tpu_custom_call.1} parent=1 // pred_fallthru
      _
    // Predicated region
    $region6: #{tpu_custom_call.1} parent=1 // pred_check
      _
    $region7: #{tpu_custom_call.1} parent=1 // pred_check_branch
      %29 = sbr.rel (0) target = $region9
    $region8: #{tpu_custom_call.1} parent=1 // pred_region
      %s31 = ssub.s32 512, 512
      %32 = vsyncadd [#allocation6], %s31
      %s33 = sshll.u32 [#allocation5], 4
      %s34 = int_to_ptr.vmem [resolvable:$true] %s33
      %39 = dma.hbm_to_vmem [thread:$0]  %s1, 512, %s34, [#allocation6], 128, 128, 8
    $region9: #{tpu_custom_call.1} parent=1 // pred_fallthru
      _
    // Predicated region
    $region10: #{tpu_custom_call.1} parent=1 // pred_check
      _
    $region11: #{tpu_custom_call.1} parent=1 // pred_check_branch
      %41 = sbr.rel (0) target = $region13
    $region12: #{tpu_custom_call.1} parent=1 // pred_region
      _
    $region13: #{tpu_custom_call.1} parent=1 // pred_fallthru
      _
    // Predicated region
    $region14: #{tpu_custom_call.1} parent=1 // pred_check
      _
    $region15: #{tpu_custom_call.1} parent=1 // pred_check_branch
      %43 = sbr.rel (0) target = $region17
    $region16: #{tpu_custom_call.1} parent=1 // pred_region
      %s45 = ssub.s32 4096, 4096
      %46 = vsyncadd [#allocation6], %s45
      %s47 = sshll.u32 [#allocation7], 4
      %s48 = int_to_ptr.vmem [resolvable:$true] %s47
      %53 = dma.hbm_to_vmem [thread:$0]  %s3, 4096, %s48, [#allocation6], 128, 128, 8
    $region17: #{tpu_custom_call.1} parent=1 // pred_fallthru
      _
    // Predicated region
    $region18: #{tpu_custom_call.1} parent=1 // pred_check
      _
    $region19: #{tpu_custom_call.1} parent=1 // pred_check_branch
      %55 = sbr.rel (0) target = $region21
    $region20: #{tpu_custom_call.1} parent=1 // pred_region
      _
    $region21: #{tpu_custom_call.1} parent=1 // pred_fallthru
      _
    // Predicated region
    $region22: #{tpu_custom_call.1} parent=1 // pred_check
      _
    $region23: #{tpu_custom_call.1} parent=1 // pred_check_branch
      %57 = sbr.rel (0) target = $region25
    $region24: #{tpu_custom_call.1} parent=1 // pred_region
      %s59 = ssub.s32 2048, 2048
      %60 = vsyncadd [#allocation9], %s59
      %s61 = sshll.u32 [#allocation8], 4
      %s62 = int_to_ptr.vmem [resolvable:$true] %s61
      %67 = dma.hbm_to_vmem [thread:$0]  %s5, 2048, %s62, [#allocation9], 64, 64, 4
    $region25: #{tpu_custom_call.1} parent=1 // pred_fallthru
      _
    // Predicated region
    $region26: #{tpu_custom_call.1} parent=1 // pred_check
      _
    $region27: #{tpu_custom_call.1} parent=1 // pred_check_branch
      %69 = sbr.rel (0) target = $region29
    $region28: #{tpu_custom_call.1} parent=1 // pred_region
      _
    $region29: #{tpu_custom_call.1} parent=1 // pred_fallthru
      _
    // Predicated region
    $region30: #{tpu_custom_call.1} parent=1 // pred_check
      _
    $region31: #{tpu_custom_call.1} parent=1 // pred_check_branch
      %71 = sbr.rel (0) target = $region33
    $region32: #{tpu_custom_call.1} parent=1 // pred_region
      %72 = dma.done [#allocation3], 192
    $region33: #{tpu_custom_call.1} parent=1 // pred_fallthru
      _
    // Predicated region
    $region34: #{tpu_custom_call.1} parent=1 // pred_check
      _
    $region35: #{tpu_custom_call.1} parent=1 // pred_check_branch
      %74 = sbr.rel (0) target = $region37
    $region36: #{tpu_custom_call.1} parent=1 // pred_region
      %75 = dma.done [#allocation6], 512
    $region37: #{tpu_custom_call.1} parent=1 // pred_fallthru
      _
    // Predicated region
    $region38: #{tpu_custom_call.1} parent=1 // pred_check
      _
    $region39: #{tpu_custom_call.1} parent=1 // pred_check_branch
      %77 = sbr.rel (0) target = $region41
    $region40: #{tpu_custom_call.1} parent=1 // pred_region
      %78 = dma.done [#allocation6], 4096
    $region41: #{tpu_custom_call.1} parent=1 // pred_fallthru
      _
    // Predicated region
    $region42: #{tpu_custom_call.1} parent=1 // pred_check
      _
    $region43: #{tpu_custom_call.1} parent=1 // pred_check_branch
      %80 = sbr.rel (0) target = $region45
    $region44: #{tpu_custom_call.1} parent=1 // pred_region
      %81 = dma.done [#allocation9], 2048
    $region45: #{tpu_custom_call.1} parent=1 // pred_fallthru
      _
    %v83 = vld [vmem:[#allocation2] sm:$0xf]
    %v84 = vld [vmem:[#allocation2 + $0x4] sm:$0xf]
    %v85 = vld [vmem:[#allocation2 + $0x8] sm:$0xf]
    %v86 = vld [vmem:[#allocation5] sm:$0xff]
    %v87 = vld [vmem:[#allocation5 + $0x8] sm:$0xff]
    %v88 = vld [vmem:[#allocation5 + $0x10] sm:$0xff]
    %v89 = vld [vmem:[#allocation5 + $0x18] sm:$0xff]
    %v90 = vld [vmem:[%s2] sm:$0x3]
    %v92 = vlaneseq
    %v93 = vshrl.u32 %v92, 7
    %v94 = vsub.s32 0, %v93
    %v95 = vrot.slane %v90, %v94
    %v96 = vlaneseq
    %v97 = vshrl.u32 %v96, 7
    %v98 = vsub.s32 1, %v97
    %v99 = vrot.slane %v90, %v98
    %v105 = vunpack.c.l.b16 %v83
    %v106 = vunpack.c.l.b16 %v84
    %v107 = vunpack.c.l.b16 %v85
    %v108 = vpack.c.b16 %v106, %v105
    %v109 = vpack.c.b16 %v107, %v107
    %v114 = vunpack.c.l.b16 %v86
    %v115 = vunpack.c.h.b16 %v86
    %v116 = vunpack.c.l.b16 %v87
    %v117 = vunpack.c.h.b16 %v87
    %v118 = vunpack.c.l.b16 %v88
    %v119 = vunpack.c.h.b16 %v88
    %v120 = vunpack.c.l.b16 %v89
    %v121 = vunpack.c.h.b16 %v89
    %v122 = vpack.c.b16 %v116, %v114
    %v123 = vpack.c.b16 %v117, %v115
    %v124 = vpack.c.b16 %v120, %v118
    %v125 = vpack.c.b16 %v121, %v119
    %vm130 = vcmask 261120
    %v132 = vsel %vm130, %v108, 0
    %v135 = vsel %vm130, %v109, 0
    %137 = vmatprep.subr.bf16.mxu0 %v123
    %138 = vmatpush1.bf16.msra.mxu0 %v122
    %139 = vmatprep.subr.bf16.mxu0 %v125
    %140 = vmatpush1.bf16.msra.mxu0 %v124
    %141 = vmatprep.subr.bf16.mxu0 0
    %142 = vmatpush1.bf16.msra.mxu0 0
    %143 = vmatprep.subr.bf16.mxu0 0
    %144 = vmatpush1.bf16.msra.mxu0 0
    %145 = vmatprep.subr.bf16.mxu0 0
    %146 = vmatpush1.bf16.msra.mxu0 0
    %147 = vmatprep.subr.bf16.mxu0 0
    %148 = vmatpush1.bf16.msra.mxu0 0
    %149 = vmatprep.subr.bf16.mxu0 0
    %150 = vmatpush1.bf16.msra.mxu0 0
    %151 = vmatprep.subr.bf16.mxu0 0
    %152 = vmatpush1.bf16.msra.mxu0 0
    %153 = vmatprep.subr.bf16.mxu0 0
    %154 = vmatpush1.bf16.msra.mxu0 0
    %155 = vmatprep.subr.bf16.mxu0 0
    %156 = vmatpush1.bf16.msra.mxu0 0
    %157 = vmatprep.subr.bf16.mxu0 0
    %158 = vmatpush1.bf16.msra.mxu0 0
    %159 = vmatprep.subr.bf16.mxu0 0
    %160 = vmatpush1.bf16.msra.mxu0 0
    %161 = vmatprep.subr.bf16.mxu0 0
    %162 = vmatpush1.bf16.msra.mxu0 0
    %163 = vmatprep.subr.bf16.mxu0 0
    %164 = vmatpush1.bf16.msra.mxu0 0
    %165 = vmatprep.subr.bf16.mxu0 0
    %166 = vmatpush1.bf16.msra.mxu0 0
    %167 = vmatprep.subr.bf16.mxu0 0
    %168 = vmatpush1.bf16.msra.mxu0 0
    %169 = vmatprep.mubr.bf16.mxu0 0
    %170 = vmatmul.mubr.bf16.gmra.mrb[0].mxu0 %v132
    %v171 = vpop.f32.mrb[0].mxu0
    %v172 = vadd.f32 %v95, %v171
    %v173 = vpop.f32.mrb[0].mxu0
    %v174 = vadd.f32 %v99, %v173
    %v175 = vpop.f32.mrb[0].mxu0
    %v176 = vadd.f32 %v95, %v175
    %v177 = vpop.f32.mrb[0].mxu0
    %v178 = vadd.f32 %v99, %v177
    %179 = vmatprep.mubr.bf16.mxu0 0
    %180 = vmatmul.mubr.bf16.gmra.mrb[0].mxu0 %v135
    %v181 = vpop.f32.mrb[0].mxu0
    %v182 = vadd.f32 %v95, %v181
    %v183 = vpop.f32.mrb[0].mxu0
    %v184 = vadd.f32 %v99, %v183
    %v185 = vpop.f32.mrb[0].mxu0
    %v186 = vpop.f32.mrb[0].mxu0
    %187 = vdwg.mxu0
    %v188 = vmax.f32 %v172, 0.0
    %v189 = vmax.f32 %v174, 0.0
    %v190 = vmax.f32 %v176, 0.0
    %v191 = vmax.f32 %v178, 0.0
    %v192 = vmax.f32 %v182, 0.0
    %v193 = vmax.f32 %v184, 0.0
    %v194 = vpack.c.bf16 %v190, %v188
    %v195 = vpack.c.bf16 %v191, %v189
    %v196 = vpack.c.bf16 %v192, %v192
    %v197 = vpack.c.bf16 %v193, %v193
    %v198 = vld [vmem:[#allocation7] sm:$0xff]
    %v199 = vld [vmem:[#allocation7 + $0x8] sm:$0xff]
    %v200 = vld [vmem:[#allocation7 + $0x10] sm:$0xff]
    %v201 = vld [vmem:[#allocation7 + $0x18] sm:$0xff]
    %v202 = vld [vmem:[#allocation7 + $0x20] sm:$0xff]
    %v203 = vld [vmem:[#allocation7 + $0x28] sm:$0xff]
    %v204 = vld [vmem:[#allocation7 + $0x30] sm:$0xff]
    %v205 = vld [vmem:[#allocation7 + $0x38] sm:$0xff]
    %v206 = vld [vmem:[#allocation7 + $0x40] sm:$0xff]
    %v207 = vld [vmem:[#allocation7 + $0x48] sm:$0xff]
    %v208 = vld [vmem:[#allocation7 + $0x50] sm:$0xff]
    %v209 = vld [vmem:[#allocation7 + $0x58] sm:$0xff]
    %v210 = vld [vmem:[#allocation7 + $0x60] sm:$0xff]
    %v211 = vld [vmem:[#allocation7 + $0x68] sm:$0xff]
    %v212 = vld [vmem:[#allocation7 + $0x70] sm:$0xff]
    %v213 = vld [vmem:[#allocation7 + $0x78] sm:$0xff]
    %v214 = vld [vmem:[#allocation7 + $0x80] sm:$0xff]
    %v215 = vld [vmem:[#allocation7 + $0x88] sm:$0xff]
    %v216 = vld [vmem:[#allocation7 + $0x90] sm:$0xff]
    %v217 = vld [vmem:[#allocation7 + $0x98] sm:$0xff]
    %v218 = vld [vmem:[#allocation7 + $0xa0] sm:$0xff]
    %v219 = vld [vmem:[#allocation7 + $0xa8] sm:$0xff]
    %v220 = vld [vmem:[#allocation7 + $0xb0] sm:$0xff]
    %v221 = vld [vmem:[#allocation7 + $0xb8] sm:$0xff]
    %v222 = vld [vmem:[#allocation7 + $0xc0] sm:$0xff]
    %v223 = vld [vmem:[#allocation7 + $0xc8] sm:$0xff]
    %v224 = vld [vmem:[#allocation7 + $0xd0] sm:$0xff]
    %v225 = vld [vmem:[#allocation7 + $0xd8] sm:$0xff]
    %v226 = vld [vmem:[#allocation7 + $0xe0] sm:$0xff]
    %v227 = vld [vmem:[#allocation7 + $0xe8] sm:$0xff]
    %v228 = vld [vmem:[#allocation7 + $0xf0] sm:$0xff]
    %v229 = vld [vmem:[#allocation7 + $0xf8] sm:$0xff]
    %v230 = vld [vmem:[%s4] sm:$0x3]
    %v232 = vlaneseq
    %v233 = vshrl.u32 %v232, 7
    %v234 = vsub.s32 0, %v233
    %v235 = vrot.slane %v230, %v234
    %v236 = vlaneseq
    %v237 = vshrl.u32 %v236, 7
    %v238 = vsub.s32 1, %v237
    %v239 = vrot.slane %v230, %v238
    %v274 = vunpack.c.l.b16 %v198
    %v275 = vunpack.c.h.b16 %v198
    %v276 = vunpack.c.l.b16 %v199
    %v277 = vunpack.c.h.b16 %v199
    %v278 = vunpack.c.l.b16 %v200
    %v279 = vunpack.c.h.b16 %v200
    %v280 = vunpack.c.l.b16 %v201
    %v281 = vunpack.c.h.b16 %v201
    %v282 = vunpack.c.l.b16 %v202
    %v283 = vunpack.c.h.b16 %v202
    %v284 = vunpack.c.l.b16 %v203
    %v285 = vunpack.c.h.b16 %v203
    %v286 = vunpack.c.l.b16 %v204
    %v287 = vunpack.c.h.b16 %v204
    %v288 = vunpack.c.l.b16 %v205
    %v289 = vunpack.c.h.b16 %v205
    %v290 = vunpack.c.l.b16 %v206
    %v291 = vunpack.c.h.b16 %v206
    %v292 = vunpack.c.l.b16 %v207
    %v293 = vunpack.c.h.b16 %v207
    %v294 = vunpack.c.l.b16 %v208
    %v295 = vunpack.c.h.b16 %v208
    %v296 = vunpack.c.l.b16 %v209
    %v297 = vunpack.c.h.b16 %v209
    %v298 = vunpack.c.l.b16 %v210
    %v299 = vunpack.c.h.b16 %v210
    %v300 = vunpack.c.l.b16 %v211
    %v301 = vunpack.c.h.b16 %v211
    %v302 = vunpack.c.l.b16 %v212
    %v303 = vunpack.c.h.b16 %v212
    %v304 = vunpack.c.l.b16 %v213
    %v305 = vunpack.c.h.b16 %v213
    %v306 = vunpack.c.l.b16 %v214
    %v307 = vunpack.c.h.b16 %v214
    %v308 = vunpack.c.l.b16 %v215
    %v309 = vunpack.c.h.b16 %v215
    %v310 = vunpack.c.l.b16 %v216
    %v311 = vunpack.c.h.b16 %v216
    %v312 = vunpack.c.l.b16 %v217
    %v313 = vunpack.c.h.b16 %v217
    %v314 = vunpack.c.l.b16 %v218
    %v315 = vunpack.c.h.b16 %v218
    %v316 = vunpack.c.l.b16 %v219
    %v317 = vunpack.c.h.b16 %v219
    %v318 = vunpack.c.l.b16 %v220
    %v319 = vunpack.c.h.b16 %v220
    %v320 = vunpack.c.l.b16 %v221
    %v321 = vunpack.c.h.b16 %v221
    %v322 = vunpack.c.l.b16 %v222
    %v323 = vunpack.c.h.b16 %v222
    %v324 = vunpack.c.l.b16 %v223
    %v325 = vunpack.c.h.b16 %v223
    %v326 = vunpack.c.l.b16 %v224
    %v327 = vunpack.c.h.b16 %v224
    %v328 = vunpack.c.l.b16 %v225
    %v329 = vunpack.c.h.b16 %v225
    %v330 = vunpack.c.l.b16 %v226
    %v331 = vunpack.c.h.b16 %v226
    %v332 = vunpack.c.l.b16 %v227
    %v333 = vunpack.c.h.b16 %v227
    %v334 = vunpack.c.l.b16 %v228
    %v335 = vunpack.c.h.b16 %v228
    %v336 = vunpack.c.l.b16 %v229
    %v337 = vunpack.c.h.b16 %v229
    %v338 = vpack.c.b16 %v276, %v274
    %v339 = vpack.c.b16 %v277, %v275
    %v340 = vpack.c.b16 %v280, %v278
    %v341 = vpack.c.b16 %v281, %v279
    %v342 = vpack.c.b16 %v284, %v282
    %v343 = vpack.c.b16 %v285, %v283
    %v344 = vpack.c.b16 %v288, %v286
    %v345 = vpack.c.b16 %v289, %v287
    %v346 = vpack.c.b16 %v292, %v290
    %v347 = vpack.c.b16 %v293, %v291
    %v348 = vpack.c.b16 %v296, %v294
    %v349 = vpack.c.b16 %v297, %v295
    %v350 = vpack.c.b16 %v300, %v298
    %v351 = vpack.c.b16 %v301, %v299
    %v352 = vpack.c.b16 %v304, %v302
    %v353 = vpack.c.b16 %v305, %v303
    %v354 = vpack.c.b16 %v308, %v306
    %v355 = vpack.c.b16 %v309, %v307
    %v356 = vpack.c.b16 %v312, %v310
    %v357 = vpack.c.b16 %v313, %v311
    %v358 = vpack.c.b16 %v316, %v314
    %v359 = vpack.c.b16 %v317, %v315
    %v360 = vpack.c.b16 %v320, %v318
    %v361 = vpack.c.b16 %v321, %v319
    %v362 = vpack.c.b16 %v324, %v322
    %v363 = vpack.c.b16 %v325, %v323
    %v364 = vpack.c.b16 %v328, %v326
    %v365 = vpack.c.b16 %v329, %v327
    %v366 = vpack.c.b16 %v332, %v330
    %v367 = vpack.c.b16 %v333, %v331
    %v368 = vpack.c.b16 %v336, %v334
    %v369 = vpack.c.b16 %v337, %v335
    %402 = vmatprep.subr.bf16.mxu0 %v339
    %403 = vmatpush1.bf16.msra.mxu0 %v338
    %404 = vmatprep.subr.bf16.mxu0 %v341
    %405 = vmatpush1.bf16.msra.mxu0 %v340
    %406 = vmatprep.subr.bf16.mxu0 %v343
    %407 = vmatpush1.bf16.msra.mxu0 %v342
    %408 = vmatprep.subr.bf16.mxu0 %v345
    %409 = vmatpush1.bf16.msra.mxu0 %v344
    %410 = vmatprep.subr.bf16.mxu0 %v347
    %411 = vmatpush1.bf16.msra.mxu0 %v346
    %412 = vmatprep.subr.bf16.mxu0 %v349
    %413 = vmatpush1.bf16.msra.mxu0 %v348
    %414 = vmatprep.subr.bf16.mxu0 %v351
    %415 = vmatpush1.bf16.msra.mxu0 %v350
    %416 = vmatprep.subr.bf16.mxu0 %v353
    %417 = vmatpush1.bf16.msra.mxu0 %v352
    %418 = vmatprep.subr.bf16.mxu0 %v355
    %419 = vmatpush1.bf16.msra.mxu0 %v354
    %420 = vmatprep.subr.bf16.mxu0 %v357
    %421 = vmatpush1.bf16.msra.mxu0 %v356
    %422 = vmatprep.subr.bf16.mxu0 %v359
    %423 = vmatpush1.bf16.msra.mxu0 %v358
    %424 = vmatprep.subr.bf16.mxu0 %v361
    %425 = vmatpush1.bf16.msra.mxu0 %v360
    %426 = vmatprep.subr.bf16.mxu0 %v363
    %427 = vmatpush1.bf16.msra.mxu0 %v362
    %428 = vmatprep.subr.bf16.mxu0 %v365
    %429 = vmatpush1.bf16.msra.mxu0 %v364
    %430 = vmatprep.subr.bf16.mxu0 %v367
    %431 = vmatpush1.bf16.msra.mxu0 %v366
    %432 = vmatprep.subr.bf16.mxu0 %v369
    %433 = vmatpush1.bf16.msra.mxu0 %v368
    %434 = vmatprep.mubr.bf16.mxu0 %v195
    %435 = vmatmul.mubr.bf16.gmra.mrb[0].mxu0 %v194
    %v436 = vpop.f32.mrb[0].mxu0
    %v437 = vadd.f32 %v235, %v436
    %v438 = vpop.f32.mrb[0].mxu0
    %v439 = vadd.f32 %v239, %v438
    %v440 = vpop.f32.mrb[0].mxu0
    %v441 = vadd.f32 %v235, %v440
    %v442 = vpop.f32.mrb[0].mxu0
    %v443 = vadd.f32 %v239, %v442
    %444 = vmatprep.mubr.bf16.mxu0 %v197
    %445 = vmatmul.mubr.bf16.gmra.mrb[0].mxu0 %v196
    %v446 = vpop.f32.mrb[0].mxu0
    %v447 = vadd.f32 %v235, %v446
    %v448 = vpop.f32.mrb[0].mxu0
    %v449 = vadd.f32 %v239, %v448
    %v450 = vpop.f32.mrb[0].mxu0
    %v451 = vpop.f32.mrb[0].mxu0
    %452 = vdwg.mxu0
    %v453 = vmax.f32 %v437, 0.0
    %v454 = vmax.f32 %v439, 0.0
    %v455 = vmax.f32 %v441, 0.0
    %v456 = vmax.f32 %v443, 0.0
    %v457 = vmax.f32 %v447, 0.0
    %v458 = vmax.f32 %v449, 0.0
    %v459 = vpack.c.bf16 %v455, %v453
    %v460 = vpack.c.bf16 %v456, %v454
    %v461 = vpack.c.bf16 %v457, %v457
    %v462 = vpack.c.bf16 %v458, %v458
    %v463 = vld [vmem:[#allocation8] sm:$0xf]
    %v464 = vld [vmem:[#allocation8 + $0x4] sm:$0xf]
    %v465 = vld [vmem:[#allocation8 + $0x8] sm:$0xf]
    %v466 = vld [vmem:[#allocation8 + $0xc] sm:$0xf]
    %v467 = vld [vmem:[#allocation8 + $0x10] sm:$0xf]
    %v468 = vld [vmem:[#allocation8 + $0x14] sm:$0xf]
    %v469 = vld [vmem:[#allocation8 + $0x18] sm:$0xf]
    %v470 = vld [vmem:[#allocation8 + $0x1c] sm:$0xf]
    %v471 = vld [vmem:[#allocation8 + $0x20] sm:$0xf]
    %v472 = vld [vmem:[#allocation8 + $0x24] sm:$0xf]
    %v473 = vld [vmem:[#allocation8 + $0x28] sm:$0xf]
    %v474 = vld [vmem:[#allocation8 + $0x2c] sm:$0xf]
    %v475 = vld [vmem:[#allocation8 + $0x30] sm:$0xf]
    %v476 = vld [vmem:[#allocation8 + $0x34] sm:$0xf]
    %v477 = vld [vmem:[#allocation8 + $0x38] sm:$0xf]
    %v478 = vld [vmem:[#allocation8 + $0x3c] sm:$0xf]
    %v479 = vld [vmem:[#allocation8 + $0x40] sm:$0xf]
    %v480 = vld [vmem:[#allocation8 + $0x44] sm:$0xf]
    %v481 = vld [vmem:[#allocation8 + $0x48] sm:$0xf]
    %v482 = vld [vmem:[#allocation8 + $0x4c] sm:$0xf]
    %v483 = vld [vmem:[#allocation8 + $0x50] sm:$0xf]
    %v484 = vld [vmem:[#allocation8 + $0x54] sm:$0xf]
    %v485 = vld [vmem:[#allocation8 + $0x58] sm:$0xf]
    %v486 = vld [vmem:[#allocation8 + $0x5c] sm:$0xf]
    %v487 = vld [vmem:[#allocation8 + $0x60] sm:$0xf]
    %v488 = vld [vmem:[#allocation8 + $0x64] sm:$0xf]
    %v489 = vld [vmem:[#allocation8 + $0x68] sm:$0xf]
    %v490 = vld [vmem:[#allocation8 + $0x6c] sm:$0xf]
    %v491 = vld [vmem:[#allocation8 + $0x70] sm:$0xf]
    %v492 = vld [vmem:[#allocation8 + $0x74] sm:$0xf]
    %v493 = vld [vmem:[#allocation8 + $0x78] sm:$0xf]
    %v494 = vld [vmem:[#allocation8 + $0x7c] sm:$0xf]
    %v495 = vld [vmem:[%s6] sm:$0x1]
    %v497 = vlaneseq
    %v498 = vshrl.u32 %v497, 7
    %v499 = vsub.s32 0, %v498
    %v500 = vrot.slane %v495, %v499
    %v534 = vunpack.c.l.b16 %v463
    %v535 = vunpack.c.l.b16 %v464
    %v536 = vunpack.c.l.b16 %v465
    %v537 = vunpack.c.l.b16 %v466
    %v538 = vunpack.c.l.b16 %v467
    %v539 = vunpack.c.l.b16 %v468
    %v540 = vunpack.c.l.b16 %v469
    %v541 = vunpack.c.l.b16 %v470
    %v542 = vunpack.c.l.b16 %v471
    %v543 = vunpack.c.l.b16 %v472
    %v544 = vunpack.c.l.b16 %v473
    %v545 = vunpack.c.l.b16 %v474
    %v546 = vunpack.c.l.b16 %v475
    %v547 = vunpack.c.l.b16 %v476
    %v548 = vunpack.c.l.b16 %v477
    %v549 = vunpack.c.l.b16 %v478
    %v550 = vunpack.c.l.b16 %v479
    %v551 = vunpack.c.l.b16 %v480
    %v552 = vunpack.c.l.b16 %v481
    %v553 = vunpack.c.l.b16 %v482
    %v554 = vunpack.c.l.b16 %v483
    %v555 = vunpack.c.l.b16 %v484
    %v556 = vunpack.c.l.b16 %v485
    %v557 = vunpack.c.l.b16 %v486
    %v558 = vunpack.c.l.b16 %v487
    %v559 = vunpack.c.l.b16 %v488
    %v560 = vunpack.c.l.b16 %v489
    %v561 = vunpack.c.l.b16 %v490
    %v562 = vunpack.c.l.b16 %v491
    %v563 = vunpack.c.l.b16 %v492
    %v564 = vunpack.c.l.b16 %v493
    %v565 = vunpack.c.l.b16 %v494
    %v566 = vpack.c.b16 %v535, %v534
    %v567 = vpack.c.b16 %v537, %v536
    %v568 = vpack.c.b16 %v539, %v538
    %v569 = vpack.c.b16 %v541, %v540
    %v570 = vpack.c.b16 %v543, %v542
    %v571 = vpack.c.b16 %v545, %v544
    %v572 = vpack.c.b16 %v547, %v546
    %v573 = vpack.c.b16 %v549, %v548
    %v574 = vpack.c.b16 %v551, %v550
    %v575 = vpack.c.b16 %v553, %v552
    %v576 = vpack.c.b16 %v555, %v554
    %v577 = vpack.c.b16 %v557, %v556
    %v578 = vpack.c.b16 %v559, %v558
    %v579 = vpack.c.b16 %v561, %v560
    %v580 = vpack.c.b16 %v563, %v562
    %v581 = vpack.c.b16 %v565, %v564
    %598 = vmatprep.subr.bf16.mxu0 0
    %599 = vmatpush1.bf16.msra.mxu0 %v566
    %600 = vmatprep.subr.bf16.mxu0 0
    %601 = vmatpush1.bf16.msra.mxu0 %v567
    %602 = vmatprep.subr.bf16.mxu0 0
    %603 = vmatpush1.bf16.msra.mxu0 %v568
    %604 = vmatprep.subr.bf16.mxu0 0
    %605 = vmatpush1.bf16.msra.mxu0 %v569
    %606 = vmatprep.subr.bf16.mxu0 0
    %607 = vmatpush1.bf16.msra.mxu0 %v570
    %608 = vmatprep.subr.bf16.mxu0 0
    %609 = vmatpush1.bf16.msra.mxu0 %v571
    %610 = vmatprep.subr.bf16.mxu0 0
    %611 = vmatpush1.bf16.msra.mxu0 %v572
    %612 = vmatprep.subr.bf16.mxu0 0
    %613 = vmatpush1.bf16.msra.mxu0 %v573
    %614 = vmatprep.subr.bf16.mxu0 0
    %615 = vmatpush1.bf16.msra.mxu0 %v574
    %616 = vmatprep.subr.bf16.mxu0 0
    %617 = vmatpush1.bf16.msra.mxu0 %v575
    %618 = vmatprep.subr.bf16.mxu0 0
    %619 = vmatpush1.bf16.msra.mxu0 %v576
    %620 = vmatprep.subr.bf16.mxu0 0
    %621 = vmatpush1.bf16.msra.mxu0 %v577
    %622 = vmatprep.subr.bf16.mxu0 0
    %623 = vmatpush1.bf16.msra.mxu0 %v578
    %624 = vmatprep.subr.bf16.mxu0 0
    %625 = vmatpush1.bf16.msra.mxu0 %v579
    %626 = vmatprep.subr.bf16.mxu0 0
    %627 = vmatpush1.bf16.msra.mxu0 %v580
    %628 = vmatprep.subr.bf16.mxu0 0
    %629 = vmatpush1.bf16.msra.mxu0 %v581
    %630 = vmatprep.mubr.bf16.mxu0 %v460
    %631 = vmatmul.mubr.bf16.gmra.mrb[0].mxu0 %v459
    %v632 = vpop.f32.mrb[0].mxu0
    %v633 = vadd.f32 %v500, %v632
    %v634 = vpop.f32.mrb[0].mxu0
    %v635 = vpop.f32.mrb[0].mxu0
    %v636 = vadd.f32 %v500, %v635
    %v637 = vpop.f32.mrb[0].mxu0
    %638 = vmatprep.mubr.bf16.mxu0 %v462
    %639 = vmatmul.mubr.bf16.gmra.mrb[0].mxu0 %v461
    %v640 = vpop.f32.mrb[0].mxu0
    %v641 = vadd.f32 %v500, %v640
    %v642 = vpop.f32.mrb[0].mxu0
    %v643 = vpop.f32.mrb[0].mxu0
    %v644 = vpop.f32.mrb[0].mxu0
    %645 = vdwg.mxu0
    %v646 = vtanh.pop %v633
    %v647 = vtanh.pop %v636
    %v648 = vtanh.pop %v641
    %v649 = vmul.f32 %v646, 2.0
    %v650 = vmul.f32 %v647, 2.0
    %v651 = vmul.f32 %v648, 2.0
    %652 = vst [vmem:[#allocation10] sm:$0xff] %v649
    %653 = vst [vmem:[#allocation10 + $0x8] sm:$0xff] %v650
    %654 = vst [vmem:[#allocation10 + $0x10] sm:$0xff] %v651
    // Predicated region
    $region46: #{tpu_custom_call.1} parent=1 // pred_check
      _
    $region47: #{tpu_custom_call.1} parent=1 // pred_check_branch
      %656 = sbr.rel (0) target = $region49
    $region48: #{tpu_custom_call.1} parent=1 // pred_region
      %s658 = ssub.s32 384, 384
      %659 = vsyncadd [#allocation4], %s658
      %s660 = sshll.u32 [#allocation10], 4
      %s661 = int_to_ptr.vmem [resolvable:$true] %s660
      %666 = dma.vmem_to_hbm [thread:$0]  %s661, 384, %s7, [#allocation4], 128, 128, 8
    $region49: #{tpu_custom_call.1} parent=1 // pred_fallthru
      _
    // Predicated region
    $region50: #{tpu_custom_call.1} parent=1 // pred_check
      _
    $region51: #{tpu_custom_call.1} parent=1 // pred_check_branch
      %668 = sbr.rel (0) target = $region53
    $region52: #{tpu_custom_call.1} parent=1 // pred_region
      %669 = dma.done [#allocation4], 384
    $region53: #{tpu_custom_call.1} parent=1 // pred_fallthru
      _
    %670 = vsyncpa [#allocation3], 1
    %671 = vsyncpa [#allocation6], 1
    %672 = vsyncpa [#allocation9], 1
    %673 = vsyncpa [#allocation4], 1

</llo_original>
